<compile_context>
chip_gen: v6e
topology: v6e:2x2x1
jax: 0.10.0
libtpu: 0.0.40
codegen_flags: <defaults>
</compile_context>

<pallas_src>
import jax
import jax.numpy as jnp
from jax.experimental import pallas as pl
from jax.experimental.pallas import tpu as pltpu


def channel_gate_kernel(x_ref, w1_ref, b1_ref, w2_ref, b2_ref, out_ref):
    # x_ref / out_ref: (TILE_B, HW, C) channels-last block (full HW, full C).
    # w1: (C, Cr); b1: (1, Cr); w2: (Cr, C); b2: (1, C)
    x = x_ref[...]
    tb, hw, _ = x.shape

    # Spatial pooling over HW -> (TILE_B, C), lane-dense in C.
    # avg_pool2d over the full window == mean; max_pool2d == max.
    avg_pool = jnp.sum(x, axis=1) * (1.0 / jnp.float32(hw))    # (TILE_B, C)
    max_pool = jnp.max(x, axis=1)                              # (TILE_B, C)

    # Fuse both pool branches into a single pass through the shared MLP:
    # one matmul per layer instead of two (halves per-block MXU latency).
    pooled = jnp.concatenate([avg_pool, max_pool], axis=0)     # (2*TILE_B, C)

    h = jnp.dot(pooled, w1_ref[...],
                preferred_element_type=jnp.float32) + b1_ref[...]
    h = jnp.maximum(h, 0.0)                                    # ReLU
    att = jnp.dot(h, w2_ref[...],
                  preferred_element_type=jnp.float32) + b2_ref[...]

    channel_att_sum = att[:tb] + att[tb:]                      # (TILE_B, C)
    scale = jax.nn.sigmoid(channel_att_sum)                    # (TILE_B, C)

    out_ref[...] = x * scale[:, None, :]                       # broadcast over HW


def channel_gate(x, w1, b1, w2, b2):
    """x: (B, C, H, W) float32. Returns (B, C, H, W) float32."""
    B, C, H, W = x.shape
    HW = H * W
    Cr = w1.shape[1]

    # Channels-last presentation for the kernel: (B, HW, C).
    x_cl = jnp.transpose(x, (0, 2, 3, 1)).reshape(B, HW, C)

    # Per-batch blocks. Each buffer is HW*C*4 bytes; with double-buffered
    # input + output this stays a few MiB for realistic C/HW and fits the
    # 32 MiB scoped VMEM budget on all of v5e/v6e/v7x.
    TILE_B = 1
    block = (TILE_B, HW, C)

    out_cl = pl.pallas_call(
        channel_gate_kernel,
        out_shape=jax.ShapeDtypeStruct((B, HW, C), jnp.float32),
        grid=(B // TILE_B,),
        in_specs=[
            pl.BlockSpec(block, lambda b: (b, 0, 0)),
            # Weights/biases: constant index_map -> loaded once, stay resident.
            pl.BlockSpec((C, Cr), lambda b: (0, 0)),
            pl.BlockSpec((1, Cr), lambda b: (0, 0)),
            pl.BlockSpec((Cr, C), lambda b: (0, 0)),
            pl.BlockSpec((1, C), lambda b: (0, 0)),
        ],
        out_specs=pl.BlockSpec(block, lambda b: (b, 0, 0)),
        compiler_params=pltpu.CompilerParams(
            dimension_semantics=("parallel",),
            vmem_limit_bytes=32 * 1024 * 1024,
        ),
    )(x_cl, w1, b1, w2, b2)

    # Back to NCHW.
    return jnp.transpose(out_cl.reshape(B, H, W, C), (0, 3, 1, 2))


def channel_gate_reference(x, w1, b1, w2, b2):
    B, C, H, W = x.shape
    xf = x.reshape(B, C, H * W)
    avg = jnp.mean(xf, axis=-1)
    mx = jnp.max(xf, axis=-1)

    def mlp(p):
        h = jnp.maximum(p @ w1 + b1, 0.0)
        return h @ w2 + b2

    scale = jax.nn.sigmoid(mlp(avg) + mlp(mx))
    return x * scale[:, :, None, None]


if __name__ == "__main__":
    # Module config: gate_channels=32, reduction_ratio=16 -> hidden=2.
    B, C, H, W = 2, 32, 8, 8
    reduction_ratio = 16
    Cr = C // reduction_ratio

    key = jax.random.PRNGKey(0)
    kx, k1, k2, k3, k4 = jax.random.split(key, 5)

    x = jax.random.normal(kx, (B, C, H, W), dtype=jnp.float32)

    # Synthetic params (shapes match nn.Linear(C, Cr), nn.Linear(Cr, C)).
    w1 = jax.random.normal(k1, (C, Cr), dtype=jnp.float32) * 0.1
    b1 = jax.random.normal(k2, (1, Cr), dtype=jnp.float32) * 0.1
    w2 = jax.random.normal(k3, (Cr, C), dtype=jnp.float32) * 0.1
    b2 = jax.random.normal(k4, (1, C), dtype=jnp.float32) * 0.1

    out = channel_gate(x, w1, b1, w2, b2)
    out = jax.block_until_ready(out)

    ref = channel_gate_reference(x, w1, b1, w2, b2)
    assert jnp.allclose(out, ref, atol=1e-5, rtol=1e-5), "mismatch vs reference"

    print("KERNEL_OK")
</pallas_src>

<mosaic_0001>
module attributes {stable_mosaic.version = 11 : i64} {
  func.func @channel_gate_kernel(%arg0: i32, %arg1: memref<1x64x32xf32, #tpu.memory_space<vmem>>, %arg2: memref<32x2xf32, #tpu.memory_space<vmem>>, %arg3: memref<1x2xf32, #tpu.memory_space<vmem>>, %arg4: memref<2x32xf32, #tpu.memory_space<vmem>>, %arg5: memref<1x32xf32, #tpu.memory_space<vmem>>, %arg6: memref<1x64x32xf32, #tpu.memory_space<vmem>>) attributes {dimension_semantics = [#tpu.dimension_semantics<parallel>], iteration_bounds = array<i64: 2>, scalar_prefetch = 0 : i64, scratch_operands = 0 : i64, tpu.core_type = #tpu.core_type<tc>, window_params = [{transform_indices = @transform_0, window_bounds = array<i64: 1, 64, 32>}, {pipeline_mode = #tpu.pipeline_mode<synchronous>, transform_indices = @transform_1, window_bounds = array<i64: 32, 2>}, {pipeline_mode = #tpu.pipeline_mode<synchronous>, transform_indices = @transform_2, window_bounds = array<i64: 1, 2>}, {pipeline_mode = #tpu.pipeline_mode<synchronous>, transform_indices = @transform_3, window_bounds = array<i64: 2, 32>}, {pipeline_mode = #tpu.pipeline_mode<synchronous>, transform_indices = @transform_4, window_bounds = array<i64: 1, 32>}, {transform_indices = @transform_5, window_bounds = array<i64: 1, 64, 32>}]} {
    %c0 = arith.constant 0 : index
    %c0_0 = arith.constant 0 : index
    %c0_1 = arith.constant 0 : index
    %0 = vector.load %arg1[%c0, %c0_0, %c0_1] : memref<1x64x32xf32, #tpu.memory_space<vmem>>, vector<1x64x32xf32>
    %cst = arith.constant dense<0.000000e+00> : vector<1x32xf32>
    %1 = vector.multi_reduction <add>, %0, %cst [1] : vector<1x64x32xf32> to vector<1x32xf32>
    %cst_2 = arith.constant 1.000000e+00 : f32
    %cst_3 = arith.constant 6.400000e+01 : f32
    %2 = arith.divf %cst_2, %cst_3 : f32
    %3 = vector.broadcast %2 : f32 to vector<1x32xf32>
    %4 = arith.mulf %1, %3 : vector<1x32xf32>
    %cst_4 = arith.constant dense<0xFF800000> : vector<1x32xf32>
    %5 = vector.multi_reduction <maximumf>, %0, %cst_4 [1] : vector<1x64x32xf32> to vector<1x32xf32>
    %6 = tpu.concatenate %4, %5 in 0 : vector<1x32xf32>, vector<1x32xf32> -> vector<2x32xf32>
    %c0_5 = arith.constant 0 : index
    %c0_6 = arith.constant 0 : index
    %7 = vector.load %arg2[%c0_5, %c0_6] : memref<32x2xf32, #tpu.memory_space<vmem>>, vector<32x2xf32>
    %cst_7 = arith.constant dense<0.000000e+00> : vector<2x2xf32>
    %8 = tpu.matmul %6, %7, %cst_7 {dimension_numbers = #tpu.dot_dimension_numbers<[1], [0], [0], [1], [0, 0, 1, 1], [], []>} : vector<2x32xf32>, vector<32x2xf32>, vector<2x2xf32> -> vector<2x2xf32>
    %c0_8 = arith.constant 0 : index
    %c0_9 = arith.constant 0 : index
    %9 = vector.load %arg3[%c0_8, %c0_9] : memref<1x2xf32, #tpu.memory_space<vmem>>, vector<1x2xf32>
    %10 = vector.broadcast %9 : vector<1x2xf32> to vector<2x2xf32>
    %11 = arith.addf %8, %10 : vector<2x2xf32>
    %cst_10 = arith.constant 0.000000e+00 : f32
    %12 = vector.broadcast %cst_10 : f32 to vector<2x2xf32>
    %13 = arith.maximumf %11, %12 : vector<2x2xf32>
    %c0_11 = arith.constant 0 : index
    %c0_12 = arith.constant 0 : index
    %14 = vector.load %arg4[%c0_11, %c0_12] : memref<2x32xf32, #tpu.memory_space<vmem>>, vector<2x32xf32>
    %cst_13 = arith.constant dense<0.000000e+00> : vector<2x32xf32>
    %15 = tpu.matmul %13, %14, %cst_13 {dimension_numbers = #tpu.dot_dimension_numbers<[1], [0], [0], [1], [0, 0, 1, 1], [], []>} : vector<2x2xf32>, vector<2x32xf32>, vector<2x32xf32> -> vector<2x32xf32>
    %c0_14 = arith.constant 0 : index
    %c0_15 = arith.constant 0 : index
    %16 = vector.load %arg5[%c0_14, %c0_15] : memref<1x32xf32, #tpu.memory_space<vmem>>, vector<1x32xf32>
    %17 = vector.broadcast %16 : vector<1x32xf32> to vector<2x32xf32>
    %18 = arith.addf %15, %17 : vector<2x32xf32>
    %19 = vector.extract_strided_slice %18 {offsets = [0, 0], sizes = [1, 32], strides = [1, 1]} : vector<2x32xf32> to vector<1x32xf32>
    %20 = vector.extract_strided_slice %18 {offsets = [1, 0], sizes = [1, 32], strides = [1, 1]} : vector<2x32xf32> to vector<1x32xf32>
    %21 = arith.addf %19, %20 : vector<1x32xf32>
    %22 = arith.negf %21 : vector<1x32xf32>
    %23 = math.exp %22 : vector<1x32xf32>
    %cst_16 = arith.constant 1.000000e+00 : f32
    %24 = vector.broadcast %cst_16 : f32 to vector<1x32xf32>
    %25 = arith.addf %24, %23 : vector<1x32xf32>
    %26 = arith.divf %24, %25 : vector<1x32xf32>
    %27 = vector.shape_cast %26 : vector<1x32xf32> to vector<1x1x32xf32>
    %28 = vector.broadcast %27 : vector<1x1x32xf32> to vector<1x64x32xf32>
    %29 = arith.mulf %0, %28 : vector<1x64x32xf32>
    %c0_17 = arith.constant 0 : index
    %c0_18 = arith.constant 0 : index
    %c0_19 = arith.constant 0 : index
    %30 = vector.load %arg6[%c0_17, %c0_18, %c0_19] : memref<1x64x32xf32, #tpu.memory_space<vmem>>, vector<1x64x32xf32>
    tpu.vector_store %arg6[%c0_17, %c0_18, %c0_19], %29 {strides = array<i32>} : memref<1x64x32xf32, #tpu.memory_space<vmem>>, vector<1x64x32xf32>,
    return
  }
  func.func @transform_0(%arg0: i32) -> (i32, i32, i32) {
    %c0_i32 = arith.constant 0 : i32
    %c0_i32_0 = arith.constant 0 : i32
    %c0_i32_1 = arith.constant 0 : i32
    return %arg0, %c0_i32, %c0_i32_0 : i32, i32, i32
  }
  func.func @transform_1(%arg0: i32) -> (i32, i32) {
    %c0_i32 = arith.constant 0 : i32
    %c0_i32_0 = arith.constant 0 : i32
    %c0_i32_1 = arith.constant 0 : i32
    return %c0_i32, %c0_i32_0 : i32, i32
  }
  func.func @transform_2(%arg0: i32) -> (i32, i32) {
    %c0_i32 = arith.constant 0 : i32
    %c0_i32_0 = arith.constant 0 : i32
    %c0_i32_1 = arith.constant 0 : i32
    return %c0_i32, %c0_i32_0 : i32, i32
  }
  func.func @transform_3(%arg0: i32) -> (i32, i32) {
    %c0_i32 = arith.constant 0 : i32
    %c0_i32_0 = arith.constant 0 : i32
    %c0_i32_1 = arith.constant 0 : i32
    return %c0_i32, %c0_i32_0 : i32, i32
  }
  func.func @transform_4(%arg0: i32) -> (i32, i32) {
    %c0_i32 = arith.constant 0 : i32
    %c0_i32_0 = arith.constant 0 : i32
    %c0_i32_1 = arith.constant 0 : i32
    return %c0_i32, %c0_i32_0 : i32, i32
  }
  func.func @transform_5(%arg0: i32) -> (i32, i32, i32) {
    %c0_i32 = arith.constant 0 : i32
    %c0_i32_0 = arith.constant 0 : i32
    %c0_i32_1 = arith.constant 0 : i32
    return %arg0, %c0_i32, %c0_i32_0 : i32, i32, i32
  }
}

</mosaic_0001>

<llo_original>
// kernel: tpu_custom_call.1
$region0: #{tpu_custom_call.1}
  #allocation0 [shape = 'u32[]', space=smem, size = 0x4, offset = 0x4, fixed_abs, tag = 'smem constant byte address 0x4 - core index']
  #allocation1 [shape = 'u32[144,128]{1,0:T(1,128)}', space=vmem, size = 0x12000, scoped, tag = 'internal scratch']
  %s0 = inlined_call_operand.vmem [shape: f32[2,64,32], index: 0, kind: input, shape index: {}]
  %s1 = inlined_call_operand.vmem [shape: f32[32,2], index: 1, kind: input, shape index: {}]
  %s2 = inlined_call_operand.vmem [shape: f32[1,2], index: 2, kind: input, shape index: {}]
  %s3 = inlined_call_operand.vmem [shape: f32[2,32], index: 3, kind: input, shape index: {}]
  %s4 = inlined_call_operand.vmem [shape: f32[1,32], index: 4, kind: input, shape index: {}]
  %s5 = inlined_call_operand.vmem [shape: f32[2,64,32], index: 5, kind: output, shape index: {}]
  %s6 = sld [smem:[#allocation0]]
  $region53: #{tpu_custom_call.1} parent=0
    _
  %s8 = ssub.s32 1, %s6
  %s9 = scalar_select 0, %s8, %s6
  loop: start=0, step=1, limit=4
  $region2: #{tpu_custom_call.1} parent=0 // loop_pre_header
    _
  $region3: #{tpu_custom_call.1} parent=0 // loop_header
    %s11 = sphi 0, %s15
    %p12 = scmp.ge.s32.totalorder %s11, 4
    %s21 = sphi 0, %s23
    %s24 = sphi 0, %s21
    %s25 = sphi 0, %s24
    %s41 = sphi 0, %s25
    %s45 = sphi 0, %s45
    %s47 = sphi 0, %s45
    %s48 = sphi 0, %s47
    %s62 = sphi 0, %s48
    %s66 = sphi 0, %s66
    %s68 = sphi 0, %s66
    %s69 = sphi 0, %s68
    %s83 = sphi 0, %s69
    %s87 = sphi 0, %s87
    %s89 = sphi 0, %s87
    %s90 = sphi 0, %s89
    %s104 = sphi 0, %s90
    %s108 = sphi 0, %s108
    %s110 = sphi 0, %s108
    %s111 = sphi 0, %s110
    %s125 = sphi 0, %s111
    %s131 = sphi 0, %s133
    %s134 = sphi 0, %s131
    %s135 = sphi 0, %s134
    %s151 = sphi 0, %s135
  $region4: #{tpu_custom_call.1} parent=0 // loop_header_branch
    %14 = sbr.rel (%p12) target = $region8
  $region5: #{tpu_custom_call.1} parent=0 // loop_body
    %s16 = ssub.s32 %s11, 1
    %s17 = ssub.s32 %s11, 2
    %s18 = sadd.s32 %s11, 1
    %s19 = ssub.s32 %s11, %s18
    %p20 = scmp.eq.s32.totalorder %s19, 0
    %s22 = sadd.s32 %s21, 1
    %s23 = scalar_select %p20, %s21, %s22
    %p26 = pneg %p20
    %p27 = scmp.eq.s32.totalorder %s11, 1
    %p28 = por %p26, %p27
    %p29 = scmp.ne.s32.totalorder %s21, %s24
    %p30 = scmp.eq.s32.totalorder %s11, 0
    %p31 = por %p29, %p30
    %p32 = scmp.ne.s32.totalorder %s21, %s24
    %p33 = scmp.eq.s32.totalorder %s16, 1
    %p34 = por %p32, %p33
    %p35 = scmp.ne.s32.totalorder %s24, %s25
    %p36 = scmp.eq.s32.totalorder %s16, 0
    %p37 = por %p35, %p36
    %p38 = scmp.ne.s32.totalorder %s24, %s25
    %p39 = scmp.eq.s32.totalorder %s17, 1
    %p40 = por %p38, %p39
    %p42 = scmp.ne.s32.totalorder %s25, %s41
    %p43 = scmp.eq.s32.totalorder %s17, 0
    %p44 = por %p42, %p43
    %s46 = sadd.s32 %s45, 1
    %p49 = scmp.eq.s32.totalorder %s11, 1
    %p50 = scmp.ne.s32.totalorder %s45, %s47
    %p51 = scmp.eq.s32.totalorder %s11, 0
    %p52 = por %p50, %p51
    %p53 = scmp.ne.s32.totalorder %s45, %s47
    %p54 = scmp.eq.s32.totalorder %s16, 1
    %p55 = por %p53, %p54
    %p56 = scmp.ne.s32.totalorder %s47, %s48
    %p57 = scmp.eq.s32.totalorder %s16, 0
    %p58 = por %p56, %p57
    %p59 = scmp.ne.s32.totalorder %s47, %s48
    %p60 = scmp.eq.s32.totalorder %s17, 1
    %p61 = por %p59, %p60
    %p63 = scmp.ne.s32.totalorder %s48, %s62
    %p64 = scmp.eq.s32.totalorder %s17, 0
    %p65 = por %p63, %p64
    %s67 = sadd.s32 %s66, 1
    %p70 = scmp.eq.s32.totalorder %s11, 1
    %p71 = scmp.ne.s32.totalorder %s66, %s68
    %p72 = scmp.eq.s32.totalorder %s11, 0
    %p73 = por %p71, %p72
    %p74 = scmp.ne.s32.totalorder %s66, %s68
    %p75 = scmp.eq.s32.totalorder %s16, 1
    %p76 = por %p74, %p75
    %p77 = scmp.ne.s32.totalorder %s68, %s69
    %p78 = scmp.eq.s32.totalorder %s16, 0
    %p79 = por %p77, %p78
    %p80 = scmp.ne.s32.totalorder %s68, %s69
    %p81 = scmp.eq.s32.totalorder %s17, 1
    %p82 = por %p80, %p81
    %p84 = scmp.ne.s32.totalorder %s69, %s83
    %p85 = scmp.eq.s32.totalorder %s17, 0
    %p86 = por %p84, %p85
    %s88 = sadd.s32 %s87, 1
    %p91 = scmp.eq.s32.totalorder %s11, 1
    %p92 = scmp.ne.s32.totalorder %s87, %s89
    %p93 = scmp.eq.s32.totalorder %s11, 0
    %p94 = por %p92, %p93
    %p95 = scmp.ne.s32.totalorder %s87, %s89
    %p96 = scmp.eq.s32.totalorder %s16, 1
    %p97 = por %p95, %p96
    %p98 = scmp.ne.s32.totalorder %s89, %s90
    %p99 = scmp.eq.s32.totalorder %s16, 0
    %p100 = por %p98, %p99
    %p101 = scmp.ne.s32.totalorder %s89, %s90
    %p102 = scmp.eq.s32.totalorder %s17, 1
    %p103 = por %p101, %p102
    %p105 = scmp.ne.s32.totalorder %s90, %s104
    %p106 = scmp.eq.s32.totalorder %s17, 0
    %p107 = por %p105, %p106
    %s109 = sadd.s32 %s108, 1
    %p112 = scmp.eq.s32.totalorder %s11, 1
    %p113 = scmp.ne.s32.totalorder %s108, %s110
    %p114 = scmp.eq.s32.totalorder %s11, 0
    %p115 = por %p113, %p114
    %p116 = scmp.ne.s32.totalorder %s108, %s110
    %p117 = scmp.eq.s32.totalorder %s16, 1
    %p118 = por %p116, %p117
    %p119 = scmp.ne.s32.totalorder %s110, %s111
    %p120 = scmp.eq.s32.totalorder %s16, 0
    %p121 = por %p119, %p120
    %p122 = scmp.ne.s32.totalorder %s110, %s111
    %p123 = scmp.eq.s32.totalorder %s17, 1
    %p124 = por %p122, %p123
    %p126 = scmp.ne.s32.totalorder %s111, %s125
    %p127 = scmp.eq.s32.totalorder %s17, 0
    %p128 = por %p126, %p127
    %s129 = ssub.s32 %s11, %s18
    %p130 = scmp.eq.s32.totalorder %s129, 0
    %s132 = sadd.s32 %s131, 1
    %s133 = scalar_select %p130, %s131, %s132
    %p136 = pneg %p130
    %p137 = scmp.eq.s32.totalorder %s11, 1
    %p138 = por %p136, %p137
    %p139 = scmp.ne.s32.totalorder %s131, %s134
    %p140 = scmp.eq.s32.totalorder %s11, 0
    %p141 = por %p139, %p140
    %p142 = scmp.ne.s32.totalorder %s131, %s134
    %p143 = scmp.eq.s32.totalorder %s16, 1
    %p144 = por %p142, %p143
    %p145 = scmp.ne.s32.totalorder %s134, %s135
    %p146 = scmp.eq.s32.totalorder %s16, 0
    %p147 = por %p145, %p146
    %p148 = scmp.ne.s32.totalorder %s134, %s135
    %p149 = scmp.eq.s32.totalorder %s17, 1
    %p150 = por %p148, %p149
    %p152 = scmp.ne.s32.totalorder %s135, %s151
    %p153 = scmp.eq.s32.totalorder %s17, 0
    %p154 = por %p152, %p153
    %p155 = scmp.le.s32.totalorder 1, %s11
    %p156 = scmp.lt.s32.totalorder %s11, 3
    %p157 = pnand %p155, %p156
    %p158 = pneg %p157
    // Predicated region
    $region9: #{tpu_custom_call.1} parent=5 // pred_check
      _
    $region10: #{tpu_custom_call.1} parent=5 // pred_check_branch
      %160 = sbr.rel (%p157) target = $region12
    $region11: #{tpu_custom_call.1} parent=5 // pred_region
      %s161 = ssub.s32 %s11, 1
      // Predicated region
      $region13: #{tpu_custom_call.1} parent=11 // pred_check
        %p162 = pneg %p58
      $region14: #{tpu_custom_call.1} parent=11 // pred_check_branch
        %164 = sbr.rel (%p162) target = $region16
      $region15: #{tpu_custom_call.1} parent=11 // pred_region
        _
      $region16: #{tpu_custom_call.1} parent=11 // pred_fallthru
        _
      // Predicated region
      $region17: #{tpu_custom_call.1} parent=11 // pred_check
        %p165 = pneg %p79
      $region18: #{tpu_custom_call.1} parent=11 // pred_check_branch
        %167 = sbr.rel (%p165) target = $region20
      $region19: #{tpu_custom_call.1} parent=11 // pred_region
        _
      $region20: #{tpu_custom_call.1} parent=11 // pred_fallthru
        _
      // Predicated region
      $region21: #{tpu_custom_call.1} parent=11 // pred_check
        %p168 = pneg %p100
      $region22: #{tpu_custom_call.1} parent=11 // pred_check_branch
        %170 = sbr.rel (%p168) target = $region24
      $region23: #{tpu_custom_call.1} parent=11 // pred_region
        _
      $region24: #{tpu_custom_call.1} parent=11 // pred_fallthru
        _
      // Predicated region
      $region25: #{tpu_custom_call.1} parent=11 // pred_check
        %p171 = pneg %p121
      $region26: #{tpu_custom_call.1} parent=11 // pred_check_branch
        %173 = sbr.rel (%p171) target = $region28
      $region27: #{tpu_custom_call.1} parent=11 // pred_region
        _
      $region28: #{tpu_custom_call.1} parent=11 // pred_fallthru
        _
    $region12: #{tpu_custom_call.1} parent=5 // pred_fallthru
      _
    %p174 = scmp.lt.s32.totalorder %s11, 2
    // Predicated region
    $region29: #{tpu_custom_call.1} parent=5 // pred_check
      %p175 = pneg %p174
    $region30: #{tpu_custom_call.1} parent=5 // pred_check_branch
      %177 = sbr.rel (%p175) target = $region32
    $region31: #{tpu_custom_call.1} parent=5 // pred_region
      // Predicated region
      $region33: #{tpu_custom_call.1} parent=31 // pred_check
        %p178 = pneg %p31
      $region34: #{tpu_custom_call.1} parent=31 // pred_check_branch
        %180 = sbr.rel (%p178) target = $region36
      $region35: #{tpu_custom_call.1} parent=31 // pred_region
        %p181 = scmp.lt.s32.totalorder %s11, 1
        %s182 = scalar_select %p181, %s11, 1
        %s183 = smul.addr %s182, 8
        %s184 = smul.addr %s183, 8
        %s185 = scalar_lea.vmem %s0, %s184
      $region36: #{tpu_custom_call.1} parent=31 // pred_fallthru
        _
    $region32: #{tpu_custom_call.1} parent=5 // pred_fallthru
      _
    %p186 = scmp.le.s32.totalorder 1, %s11
    %p187 = scmp.lt.s32.totalorder %s11, 3
    %p188 = pnand %p186, %p187
    %p189 = pneg %p188
    // Predicated region
    $region37: #{tpu_custom_call.1} parent=5 // pred_check
      _
    $region38: #{tpu_custom_call.1} parent=5 // pred_check_branch
      %191 = sbr.rel (%p188) target = $region40
    $region39: #{tpu_custom_call.1} parent=5 // pred_region
      %s192 = ssub.s32 %s11, 1
      %p193 = scmp.lt.s32.totalorder %s16, 1
      %s194 = scalar_select %p193, %s16, 1
      %s195 = smul.addr %s194, 8
      %s196 = smul.addr %s195, 8
      %s197 = scalar_lea.vmem %s0, %s196
      %p198 = pneg %p37
      %p199 = pneg %p34
      %p200 = pneg %p58
      %p201 = pneg %p55
      %p202 = pneg %p79
      %p203 = pneg %p76
      %p204 = pneg %p100
      %p205 = pneg %p97
      %p206 = pneg %p121
      %p207 = pneg %p118
      %p208 = pneg %p147
      %p209 = pneg %p144
      %p210 = scmp.lt.s32.totalorder %s16, 1
      %s211 = scalar_select %p210, %s16, 1
      %s212 = smul.addr %s211, 8
      %s213 = smul.addr %s212, 8
      %s214 = scalar_lea.vmem %s5, %s213
      %p215 = scmp.lt.s32.totalorder %s16, 1
      %s216 = scalar_select %p215, %s16, 1
      %s217 = smul.addr %s216, 8
      %s218 = smul.addr %s217, 8
      %s219 = scalar_lea.vmem %s0, %s218
      %p220 = scmp.lt.s32.totalorder %s16, 1
      %s221 = scalar_select %p220, %s16, 1
      %s222 = smul.addr %s221, 8
      %s223 = smul.addr %s222, 8
      %s224 = scalar_lea.vmem %s5, %s223
      %v225 = vld [vmem:[%s219] sm:$0xff]
      %v226 = vld [vmem:[%s219 + $0x8] sm:$0xff]
      %v227 = vld [vmem:[%s219 + $0x10] sm:$0xff]
      %v228 = vld [vmem:[%s219 + $0x18] sm:$0xff]
      %v229 = vld [vmem:[%s219 + $0x20] sm:$0xff]
      %v230 = vld [vmem:[%s219 + $0x28] sm:$0xff]
      %v231 = vld [vmem:[%s219 + $0x30] sm:$0xff]
      %v232 = vld [vmem:[%s219 + $0x38] sm:$0xff]
      %vm233 = vcmask 261120
      %v234 = vsel %vm233, %v225, 0.0
      %v235 = vsel %vm233, %v226, 0.0
      %v236 = vadd.f32 %v234, %v235
      %v237 = vsel %vm233, %v227, 0.0
      %v238 = vadd.f32 %v236, %v237
      %v239 = vsel %vm233, %v228, 0.0
      %v240 = vadd.f32 %v238, %v239
      %v241 = vsel %vm233, %v229, 0.0
      %v242 = vadd.f32 %v240, %v241
      %v243 = vsel %vm233, %v230, 0.0
      %v244 = vadd.f32 %v242, %v243
      %v245 = vsel %vm233, %v231, 0.0
      %v246 = vadd.f32 %v244, %v245
      %v247 = vsel %vm233, %v232, 0.0
      %v248 = vadd.f32 %v246, %v247
      %v249 = vrot.slane %v248, 4
      %v250 = vadd.f32 %v248, %v249
      %v251 = vrot.slane %v250, 2
      %v252 = vadd.f32 %v250, %v251
      %v253 = vrot.slane %v252, 1
      %v254 = vadd.f32 %v252, %v253
      %v255 = vmul.f32 %v254, 0.015625
      %v256 = vsel %vm233, %v225, -inf
      %v257 = vsel %vm233, %v226, -inf
      %v258 = vsel %vm233, %v227, -inf
      %v259 = vsel %vm233, %v228, -inf
      %v260 = vsel %vm233, %v229, -inf
      %v261 = vmax.f32 %v256, %v260
      %v262 = vsel %vm233, %v230, -inf
      %v263 = vmax.f32 %v257, %v262
      %v264 = vsel %vm233, %v231, -inf
      %v265 = vmax.f32 %v258, %v264
      %v266 = vsel %vm233, %v232, -inf
      %v267 = vmax.f32 %v259, %v266
      %v268 = vmax.f32 %v261, %v263
      %v269 = vmax.f32 %v265, %v267
      %v270 = vmax.f32 %v268, %v269
      %v271 = vrot.slane %v270, 4
      %v272 = vmax.f32 %v270, %v271
      %v273 = vrot.slane %v272, 2
      %v274 = vmax.f32 %v272, %v273
      %v275 = vrot.slane %v274, 1
      %v276 = vmax.f32 %v274, %v275
      %vm277 = vcmask 1040384
      %v278 = vsel %vm277, %v255, %v276
      %v279 = vld [vmem:[%s1] sm:$0xff]
      %v280 = vld [vmem:[%s1 + $0x8] sm:$0xff]
      %v281 = vld [vmem:[%s1 + $0x10] sm:$0xff]
      %v282 = vld [vmem:[%s1 + $0x18] sm:$0xff]
      %v283 = vld [vmem:[%s2] sm:$0x1]
      %v285 = vlaneseq
      %v286 = vshrl.u32 %v285, 7
      %v287 = vsub.s32 0, %v286
      %v288 = vrot.slane %v283, %v287
      %v291 = vsel %vm233, %v278, 0
      %293 = vmatprep.subr.mxu0 0.0
      %294 = vmatpush1.msra.mxu0 0.0
      %295 = vmatprep.subr.mxu0 0.0
      %296 = vmatpush1.msra.mxu0 0.0
      %297 = vmatprep.subr.mxu0 0.0
      %298 = vmatpush1.msra.mxu0 0.0
      %299 = vmatprep.subr.mxu0 0.0
      %300 = vmatpush1.msra.mxu0 0.0
      %301 = vmatprep.subr.mxu0 0.0
      %302 = vmatpush1.msra.mxu0 0.0
      %303 = vmatprep.subr.mxu0 0.0
      %304 = vmatpush1.msra.mxu0 0.0
      %305 = vmatprep.subr.mxu0 0.0
      %306 = vmatpush1.msra.mxu0 0.0
      %307 = vmatprep.subr.mxu0 0.0
      %308 = vmatpush1.msra.mxu0 0.0
      %309 = vmatprep.subr.mxu0 0.0
      %310 = vmatpush1.msra.mxu0 0.0
      %311 = vmatprep.subr.mxu0 0.0
      %312 = vmatpush1.msra.mxu0 0.0
      %313 = vmatprep.subr.mxu0 0.0
      %314 = vmatpush1.msra.mxu0 0.0
      %315 = vmatprep.subr.mxu0 0.0
      %316 = vmatpush1.msra.mxu0 0.0
      %317 = vmatprep.subr.mxu0 0.0
      %318 = vmatpush1.msra.mxu0 %v282
      %319 = vmatprep.subr.mxu0 0.0
      %320 = vmatpush1.msra.mxu0 %v281
      %321 = vmatprep.subr.mxu0 0.0
      %322 = vmatpush1.msra.mxu0 %v280
      %323 = vmatprep.subr.mxu0 0.0
      %324 = vmatpush1.msra.mxu0 %v279
      %325 = vmatprep.subr.mxu0 0.0
      %326 = vmatpush2.msra.mxu0 0.0
      %327 = vmatprep.subr.mxu0 0.0
      %328 = vmatpush2.msra.mxu0 0.0
      %329 = vmatprep.subr.mxu0 0.0
      %330 = vmatpush2.msra.mxu0 0.0
      %331 = vmatprep.subr.mxu0 0.0
      %332 = vmatpush2.msra.mxu0 0.0
      %333 = vmatprep.subr.mxu0 0.0
      %334 = vmatpush2.msra.mxu0 0.0
      %335 = vmatprep.subr.mxu0 0.0
      %336 = vmatpush2.msra.mxu0 0.0
      %337 = vmatprep.subr.mxu0 0.0
      %338 = vmatpush2.msra.mxu0 0.0
      %339 = vmatprep.subr.mxu0 0.0
      %340 = vmatpush2.msra.mxu0 0.0
      %341 = vmatprep.subr.mxu0 0.0
      %342 = vmatpush2.msra.mxu0 0.0
      %343 = vmatprep.subr.mxu0 0.0
      %344 = vmatpush2.msra.mxu0 0.0
      %345 = vmatprep.subr.mxu0 0.0
      %346 = vmatpush2.msra.mxu0 0.0
      %347 = vmatprep.subr.mxu0 0.0
      %348 = vmatpush2.msra.mxu0 0.0
      %349 = vmatprep.subr.mxu0 0.0
      %350 = vmatpush2.msra.mxu0 0.0
      %351 = vmatprep.subr.mxu0 0.0
      %352 = vmatpush2.msra.mxu0 0.0
      %353 = vmatprep.subr.mxu0 0.0
      %354 = vmatpush2.msra.mxu0 0.0
      %355 = vmatprep.subr.mxu0 0.0
      %356 = vmatpush2.msra.mxu0 0.0
      %357 = vmatprep.mubr.f32.mxu0 0.0
      %358 = vmatmul.mubr.f32.gmra.mxu0 %v291
      %v359 = vpop.f32.mrf.mxu0
      %v360 = vadd.f32 %v288, %v359
      %v361 = vpop.f32.mrf.mxu0
      %362 = vdwg.mxu0
      %v363 = vmax.f32 %v360, 0.0
      %v364 = vld [vmem:[%s3] sm:$0x3]
      %v365 = vld [vmem:[%s4] sm:$0x1]
      %v367 = vlaneseq
      %v368 = vshrl.u32 %v367, 7
      %v369 = vsub.s32 0, %v368
      %v370 = vrot.slane %v365, %v369
      %vm372 = vcmask 15360
      %v374 = vsel %vm372, %v363, 0
      %vm376 = vcmask 1041408
      %v378 = vsel %vm376, %v364, 0
      %380 = vmatprep.subr.mxu0 0.0
      %381 = vmatpush1.msra.mxu0 0.0
      %382 = vmatprep.subr.mxu0 0.0
      %383 = vmatpush1.msra.mxu0 0.0
      %384 = vmatprep.subr.mxu0 0.0
      %385 = vmatpush1.msra.mxu0 0.0
      %386 = vmatprep.subr.mxu0 0.0
      %387 = vmatpush1.msra.mxu0 0.0
      %388 = vmatprep.subr.mxu0 0.0
      %389 = vmatpush1.msra.mxu0 0.0
      %390 = vmatprep.subr.mxu0 0.0
      %391 = vmatpush1.msra.mxu0 0.0
      %392 = vmatprep.subr.mxu0 0.0
      %393 = vmatpush1.msra.mxu0 0.0
      %394 = vmatprep.subr.mxu0 0.0
      %395 = vmatpush1.msra.mxu0 0.0
      %396 = vmatprep.subr.mxu0 0.0
      %397 = vmatpush1.msra.mxu0 0.0
      %398 = vmatprep.subr.mxu0 0.0
      %399 = vmatpush1.msra.mxu0 0.0
      %400 = vmatprep.subr.mxu0 0.0
      %401 = vmatpush1.msra.mxu0 0.0
      %402 = vmatprep.subr.mxu0 0.0
      %403 = vmatpush1.msra.mxu0 0.0
      %404 = vmatprep.subr.mxu0 0.0
      %405 = vmatpush1.msra.mxu0 0.0
      %406 = vmatprep.subr.mxu0 0.0
      %407 = vmatpush1.msra.mxu0 0.0
      %408 = vmatprep.subr.mxu0 0.0
      %409 = vmatpush1.msra.mxu0 0.0
      %410 = vmatprep.subr.mxu0 0.0
      %411 = vmatpush1.msra.mxu0 %v378
      %412 = vmatprep.subr.mxu0 0.0
      %413 = vmatpush2.msra.mxu0 0.0
      %414 = vmatprep.subr.mxu0 0.0
      %415 = vmatpush2.msra.mxu0 0.0
      %416 = vmatprep.subr.mxu0 0.0
      %417 = vmatpush2.msra.mxu0 0.0
      %418 = vmatprep.subr.mxu0 0.0
      %419 = vmatpush2.msra.mxu0 0.0
      %420 = vmatprep.subr.mxu0 0.0
      %421 = vmatpush2.msra.mxu0 0.0
      %422 = vmatprep.subr.mxu0 0.0
      %423 = vmatpush2.msra.mxu0 0.0
      %424 = vmatprep.subr.mxu0 0.0
      %425 = vmatpush2.msra.mxu0 0.0
      %426 = vmatprep.subr.mxu0 0.0
      %427 = vmatpush2.msra.mxu0 0.0
      %428 = vmatprep.subr.mxu0 0.0
      %429 = vmatpush2.msra.mxu0 0.0
      %430 = vmatprep.subr.mxu0 0.0
      %431 = vmatpush2.msra.mxu0 0.0
      %432 = vmatprep.subr.mxu0 0.0
      %433 = vmatpush2.msra.mxu0 0.0
      %434 = vmatprep.subr.mxu0 0.0
      %435 = vmatpush2.msra.mxu0 0.0
      %436 = vmatprep.subr.mxu0 0.0
      %437 = vmatpush2.msra.mxu0 0.0
      %438 = vmatprep.subr.mxu0 0.0
      %439 = vmatpush2.msra.mxu0 0.0
      %440 = vmatprep.subr.mxu0 0.0
      %441 = vmatpush2.msra.mxu0 0.0
      %442 = vmatprep.subr.mxu0 0.0
      %443 = vmatpush2.msra.mxu0 0.0
      %444 = vmatprep.mubr.f32.mxu0 0.0
      %445 = vmatmul.mubr.f32.gmra.mxu0 %v374
      %v446 = vpop.f32.mrf.mxu0
      %v447 = vadd.f32 %v370, %v446
      %v448 = vpop.f32.mrf.mxu0
      %449 = vdwg.mxu0
      %v451 = vrot.slane %v447, 1
      %v453 = vadd.f32 %v447, %v451
      %v454 = vxor.u32 %v453, 2147483648
      %v455 = vmul.f32 %v454, 1.442695
      %v456 = vpow.pop %v455
      %v457 = vadd.f32 %v456, 1.0
      %v458 = vrcp.pop %v457
      %v459 = vmul.f32 1.0, %v458
      %v460 = vlaneseq
      %v461 = vshrl.u32 %v460, 7
      %v462 = vsub.s32 0, %v461
      %v463 = vrot.slane %v459, %v462
      %v464 = vmul.f32 %v225, %v463
      %v465 = vmul.f32 %v226, %v463
      %v466 = vmul.f32 %v227, %v463
      %v467 = vmul.f32 %v228, %v463
      %v468 = vmul.f32 %v229, %v463
      %v469 = vmul.f32 %v230, %v463
      %v470 = vmul.f32 %v231, %v463
      %v471 = vmul.f32 %v232, %v463
      %472 = vst.msk [vmem:[%s224] sm:$0xff] %vm233, %v464
      %473 = vst.msk [vmem:[%s224 + $0x8] sm:$0xff] %vm233, %v465
      %474 = vst.msk [vmem:[%s224 + $0x10] sm:$0xff] %vm233, %v466
      %475 = vst.msk [vmem:[%s224 + $0x18] sm:$0xff] %vm233, %v467
      %476 = vst.msk [vmem:[%s224 + $0x20] sm:$0xff] %vm233, %v468
      %477 = vst.msk [vmem:[%s224 + $0x28] sm:$0xff] %vm233, %v469
      %478 = vst.msk [vmem:[%s224 + $0x30] sm:$0xff] %vm233, %v470
      %479 = vst.msk [vmem:[%s224 + $0x38] sm:$0xff] %vm233, %v471
      %p480 = scmp.lt.s32.totalorder %s16, 1
      %s481 = scalar_select %p480, %s16, 1
      %s482 = smul.addr %s481, 8
      %s483 = smul.addr %s482, 8
      %s484 = scalar_lea.vmem %s5, %s483
      // Predicated region
      $region41: #{tpu_custom_call.1} parent=39 // pred_check
        %p485 = pneg %p144
      $region42: #{tpu_custom_call.1} parent=39 // pred_check_branch
        %487 = sbr.rel (%p485) target = $region44
      $region43: #{tpu_custom_call.1} parent=39 // pred_region
        _
      $region44: #{tpu_custom_call.1} parent=39 // pred_fallthru
        _
    $region40: #{tpu_custom_call.1} parent=5 // pred_fallthru
      _
    %p488 = scmp.le.s32.totalorder 2, %s11
    // Predicated region
    $region45: #{tpu_custom_call.1} parent=5 // pred_check
      %p489 = pneg %p488
    $region46: #{tpu_custom_call.1} parent=5 // pred_check_branch
      %491 = sbr.rel (%p489) target = $region48
    $region47: #{tpu_custom_call.1} parent=5 // pred_region
      %s492 = ssub.s32 %s11, 2
      // Predicated region
      $region49: #{tpu_custom_call.1} parent=47 // pred_check
        %p493 = pneg %p150
      $region50: #{tpu_custom_call.1} parent=47 // pred_check_branch
        %495 = sbr.rel (%p493) target = $region52
      $region51: #{tpu_custom_call.1} parent=47 // pred_region
        %p496 = scmp.lt.s32.totalorder %s17, 1
        %s497 = scalar_select %p496, %s17, 1
        %s498 = smul.addr %s497, 8
        %s499 = smul.addr %s498, 8
        %s500 = scalar_lea.vmem %s5, %s499
      $region52: #{tpu_custom_call.1} parent=47 // pred_fallthru
        _
    $region48: #{tpu_custom_call.1} parent=5 // pred_fallthru
      _
  $region6: #{tpu_custom_call.1} parent=0 // loop_footer
    %s15 = sadd.s32 1, %s11
  $region7: #{tpu_custom_call.1} parent=0 // loop_footer_branch
    %10 = sbr.rel target = $region3
  $region8: #{tpu_custom_call.1} parent=0 // loop_exit
    _

</llo_original>
